<compile_context>
chip_gen: v7x
topology: tpu7x:2x2x1
jax: 0.10.0
libtpu: 0.0.40
codegen_flags: <defaults>
</compile_context>

<pallas_src>
import jax
import jax.numpy as jnp
from jax import lax
from jax.experimental import pallas as pl
from jax.experimental.pallas import tpu as pltpu


def mf_kernel(u_ref, v_ref, out_ref):
    # u_ref: (3, tm, K) packed as [mu, log_sigma, eps]; v_ref: (3, Cp, K).
    # Reparameterized samples (guide): mu + exp(log_sigma_param) * eps
    U = u_ref[0] + jnp.exp(u_ref[1]) * u_ref[2]
    V = v_ref[0] + jnp.exp(v_ref[1]) * v_ref[2]
    # model: matmul(U, V^T) expressed as an NT contraction on K (no transpose).
    out_ref[...] = lax.dot_general(
        U, V,
        dimension_numbers=(((1,), (1,)), ((), ())),
        preferred_element_type=jnp.float32,
    )


def _pad_rows(x, multiple):
    r = x.shape[0]
    pad = (-r) % multiple
    if pad == 0:
        return x
    return jnp.pad(x, ((0, pad), (0, 0)))


def mf_forward(qu_mu, qu_sigma, eps_u, qv_mu, qv_sigma, eps_v):
    R, K = qu_mu.shape
    C, _ = qv_mu.shape

    # Pad rows/cols up to 128-multiples so the output tile is lane-dense
    # (unmasked vst) and row tiles are sublane-aligned. Zero-padded eps/mu
    # give V=0 rows, and the padded region is sliced off below.
    Rp = R + ((-R) % 128)
    Cp = C + ((-C) % 128)

    u_params = jnp.stack(
        [_pad_rows(qu_mu, 128), _pad_rows(qu_sigma, 128), _pad_rows(eps_u, 128)],
        axis=0)                                     # (3, Rp, K)
    v_params = jnp.stack(
        [_pad_rows(qv_mu, 128), _pad_rows(qv_sigma, 128), _pad_rows(eps_v, 128)],
        axis=0)                                     # (3, Cp, K)

    # Row tile: 256 if it divides Rp, else 128 (Rp is always a 128-multiple).
    tm = 256 if Rp % 256 == 0 else 128
    grid = (Rp // tm,)

    out_padded = pl.pallas_call(
        mf_kernel,
        out_shape=jax.ShapeDtypeStruct((Rp, Cp), jnp.float32),
        grid=grid,
        in_specs=[
            # U-side params: row-tiled along the grid.
            pl.BlockSpec((3, tm, K), lambda i: (0, i, 0)),
            # V-side params: small, stay resident in VMEM for all grid steps.
            pl.BlockSpec((3, Cp, K), lambda i: (0, 0, 0)),
        ],
        out_specs=pl.BlockSpec((tm, Cp), lambda i: (i, 0)),
        compiler_params=pltpu.CompilerParams(
            dimension_semantics=("parallel",),
        ),
    )(u_params, v_params)

    if Rp == R and Cp == C:
        return out_padded
    return out_padded[:R, :C]


if __name__ == "__main__":
    # Deterministic synthetic parameters (module __init__ gives only shapes).
    row_dim, col_dim, K = 256, 128, 32

    key = jax.random.PRNGKey(0)
    k1, k2, k3, k4, k5, k6 = jax.random.split(key, 6)

    # guide's pyro.params: qu_mu, qu_sigma ~ randn(U_size); qv_mu, qv_sigma ~ randn(V_size)
    qu_mu = jax.random.normal(k1, (row_dim, K), dtype=jnp.float32)
    qu_sigma = jax.random.normal(k2, (row_dim, K), dtype=jnp.float32)
    qv_mu = jax.random.normal(k3, (col_dim, K), dtype=jnp.float32)
    qv_sigma = jax.random.normal(k4, (col_dim, K), dtype=jnp.float32)

    # standard-normal noise for the reparameterized samples
    eps_u = jax.random.normal(k5, (row_dim, K), dtype=jnp.float32)
    eps_v = jax.random.normal(k6, (col_dim, K), dtype=jnp.float32)

    out = mf_forward(qu_mu, qu_sigma, eps_u, qv_mu, qv_sigma, eps_v)
    out = jax.block_until_ready(out)

    # Reference check in plain JAX.
    U = qu_mu + jnp.exp(qu_sigma) * eps_u
    V = qv_mu + jnp.exp(qv_sigma) * eps_v
    ref = U @ V.T
    assert out.shape == (row_dim, col_dim)
    assert jnp.allclose(out, ref, atol=1e-4, rtol=1e-4)

    # TODO(synk): pyro.sample/observe (Bernoulli likelihood scoring & SVI) have
    # no Pallas equivalent; only the deterministic hot path (reparam + matmul)
    # is implemented.
    print("KERNEL_OK")
</pallas_src>

<mosaic_0001>
module attributes {stable_mosaic.version = 11 : i64} {
  func.func @mf_kernel(%arg0: i32, %arg1: memref<3x256x32xf32, #tpu.memory_space<vmem>>, %arg2: memref<3x128x32xf32, #tpu.memory_space<vmem>>, %arg3: memref<256x128xf32, #tpu.memory_space<vmem>>) attributes {dimension_semantics = [#tpu.dimension_semantics<parallel>], iteration_bounds = array<i64: 1>, scalar_prefetch = 0 : i64, scratch_operands = 0 : i64, tpu.core_type = #tpu.core_type<tc>, window_params = [{transform_indices = @transform_0, window_bounds = array<i64: 3, 256, 32>}, {pipeline_mode = #tpu.pipeline_mode<synchronous>, transform_indices = @transform_1, window_bounds = array<i64: 3, 128, 32>}, {transform_indices = @transform_2, window_bounds = array<i64: 256, 128>}]} {
    %c0 = arith.constant 0 : index
    %c0_0 = arith.constant 0 : index
    %c0_1 = arith.constant 0 : index
    %0 = vector.load %arg1[%c0, %c0_0, %c0_1] : memref<3x256x32xf32, #tpu.memory_space<vmem>>, vector<1x256x32xf32>
    %1 = vector.shape_cast %0 : vector<1x256x32xf32> to vector<256x32xf32>
    %c1 = arith.constant 1 : index
    %c0_2 = arith.constant 0 : index
    %c0_3 = arith.constant 0 : index
    %2 = vector.load %arg1[%c1, %c0_2, %c0_3] : memref<3x256x32xf32, #tpu.memory_space<vmem>>, vector<1x256x32xf32>
    %3 = vector.shape_cast %2 : vector<1x256x32xf32> to vector<256x32xf32>
    %4 = math.exp %3 : vector<256x32xf32>
    %c2 = arith.constant 2 : index
    %c0_4 = arith.constant 0 : index
    %c0_5 = arith.constant 0 : index
    %5 = vector.load %arg1[%c2, %c0_4, %c0_5] : memref<3x256x32xf32, #tpu.memory_space<vmem>>, vector<1x256x32xf32>
    %6 = vector.shape_cast %5 : vector<1x256x32xf32> to vector<256x32xf32>
    %7 = arith.mulf %4, %6 : vector<256x32xf32>
    %8 = arith.addf %1, %7 : vector<256x32xf32>
    %c0_6 = arith.constant 0 : index
    %c0_7 = arith.constant 0 : index
    %c0_8 = arith.constant 0 : index
    %9 = vector.load %arg2[%c0_6, %c0_7, %c0_8] : memref<3x128x32xf32, #tpu.memory_space<vmem>>, vector<1x128x32xf32>
    %10 = vector.shape_cast %9 : vector<1x128x32xf32> to vector<128x32xf32>
    %c1_9 = arith.constant 1 : index
    %c0_10 = arith.constant 0 : index
    %c0_11 = arith.constant 0 : index
    %11 = vector.load %arg2[%c1_9, %c0_10, %c0_11] : memref<3x128x32xf32, #tpu.memory_space<vmem>>, vector<1x128x32xf32>
    %12 = vector.shape_cast %11 : vector<1x128x32xf32> to vector<128x32xf32>
    %13 = math.exp %12 : vector<128x32xf32>
    %c2_12 = arith.constant 2 : index
    %c0_13 = arith.constant 0 : index
    %c0_14 = arith.constant 0 : index
    %14 = vector.load %arg2[%c2_12, %c0_13, %c0_14] : memref<3x128x32xf32, #tpu.memory_space<vmem>>, vector<1x128x32xf32>
    %15 = vector.shape_cast %14 : vector<1x128x32xf32> to vector<128x32xf32>
    %16 = arith.mulf %13, %15 : vector<128x32xf32>
    %17 = arith.addf %10, %16 : vector<128x32xf32>
    %cst = arith.constant dense<0.000000e+00> : vector<256x128xf32>
    %18 = tpu.matmul %8, %17, %cst {dimension_numbers = #tpu.dot_dimension_numbers<[1], [1], [0], [0], [0, 0, 1, 0], [], []>} : vector<256x32xf32>, vector<128x32xf32>, vector<256x128xf32> -> vector<256x128xf32>
    %c0_15 = arith.constant 0 : index
    %c0_16 = arith.constant 0 : index
    %19 = vector.load %arg3[%c0_15, %c0_16] : memref<256x128xf32, #tpu.memory_space<vmem>>, vector<256x128xf32>
    tpu.vector_store %arg3[%c0_15, %c0_16], %18 {strides = array<i32>} : memref<256x128xf32, #tpu.memory_space<vmem>>, vector<256x128xf32>,
    return
  }
  func.func @transform_0(%arg0: i32) -> (i32, i32, i32) {
    %c0_i32 = arith.constant 0 : i32
    %c0_i32_0 = arith.constant 0 : i32
    %c0_i32_1 = arith.constant 0 : i32
    return %c0_i32, %arg0, %c0_i32_0 : i32, i32, i32
  }
  func.func @transform_1(%arg0: i32) -> (i32, i32, i32) {
    %c0_i32 = arith.constant 0 : i32
    %c0_i32_0 = arith.constant 0 : i32
    %c0_i32_1 = arith.constant 0 : i32
    %c0_i32_2 = arith.constant 0 : i32
    return %c0_i32, %c0_i32_0, %c0_i32_1 : i32, i32, i32
  }
  func.func @transform_2(%arg0: i32) -> (i32, i32) {
    %c0_i32 = arith.constant 0 : i32
    %c0_i32_0 = arith.constant 0 : i32
    return %arg0, %c0_i32 : i32, i32
  }
}

</mosaic_0001>

<llo_original>
// kernel: tpu_custom_call.1
$region0: #{tpu_custom_call.1}
  #allocation0 [shape = 'u32[]', space=smem, size = 0x4, offset = 0x4, fixed_abs, tag = 'smem constant byte address 0x4 - core index']
  #allocation1 [shape = 'u32[144,128]{1,0:T(1,128)}', space=vmem, size = 0x12000, scoped, tag = 'internal scratch']
  %s0 = inlined_call_operand.vmem [shape: f32[3,256,32], index: 0, kind: input, shape index: {}]
  %s1 = inlined_call_operand.vmem [shape: f32[3,128,32], index: 1, kind: input, shape index: {}]
  %s2 = inlined_call_operand.hbm [shape: f32[256,128], index: 2, kind: output, shape index: {}]
  %s3 = sld [smem:[#allocation0]]
  $region18: #{tpu_custom_call.1} parent=0
    _
  %s5 = ssub.s32 1, %s3
  %s6 = scalar_select 0, %s5, %s3
  $region1: #{tpu_custom_call.1} parent=0
    #allocation2 [shape = 'u8[131072]{0}', space=vmem, size = 0x20000, scoped, tag = 'output window, operand 0, single buffered']
    #allocation3 [shape = 's32[1]{0}', space=sflag, size = 0x4, scoped, tag = 'scoped memory for tpu_custom_call.1']
    %7 = vsyncpa [#allocation3], 0
    // Predicated region
    $region2: #{tpu_custom_call.1} parent=1 // pred_check
      _
    $region3: #{tpu_custom_call.1} parent=1 // pred_check_branch
      %9 = sbr.rel (0) target = $region5
    $region4: #{tpu_custom_call.1} parent=1 // pred_region
      _
    $region5: #{tpu_custom_call.1} parent=1 // pred_fallthru
      _
    // Predicated region
    $region6: #{tpu_custom_call.1} parent=1 // pred_check
      _
    $region7: #{tpu_custom_call.1} parent=1 // pred_check_branch
      %11 = sbr.rel (0) target = $region9
    $region8: #{tpu_custom_call.1} parent=1 // pred_region
      _
    $region9: #{tpu_custom_call.1} parent=1 // pred_fallthru
      _
    %v12 = vld [vmem:[%s0] sm:$0xff]
    %v13 = vld [vmem:[%s0 + $0x8] sm:$0xff]
    %v14 = vld [vmem:[%s0 + $0x10] sm:$0xff]
    %v15 = vld [vmem:[%s0 + $0x18] sm:$0xff]
    %v16 = vld [vmem:[%s0 + $0x20] sm:$0xff]
    %v17 = vld [vmem:[%s0 + $0x28] sm:$0xff]
    %v18 = vld [vmem:[%s0 + $0x30] sm:$0xff]
    %v19 = vld [vmem:[%s0 + $0x38] sm:$0xff]
    %v20 = vld [vmem:[%s0 + $0x40] sm:$0xff]
    %v21 = vld [vmem:[%s0 + $0x48] sm:$0xff]
    %v22 = vld [vmem:[%s0 + $0x50] sm:$0xff]
    %v23 = vld [vmem:[%s0 + $0x58] sm:$0xff]
    %v24 = vld [vmem:[%s0 + $0x60] sm:$0xff]
    %v25 = vld [vmem:[%s0 + $0x68] sm:$0xff]
    %v26 = vld [vmem:[%s0 + $0x70] sm:$0xff]
    %v27 = vld [vmem:[%s0 + $0x78] sm:$0xff]
    %v28 = vld [vmem:[%s0 + $0x80] sm:$0xff]
    %v29 = vld [vmem:[%s0 + $0x88] sm:$0xff]
    %v30 = vld [vmem:[%s0 + $0x90] sm:$0xff]
    %v31 = vld [vmem:[%s0 + $0x98] sm:$0xff]
    %v32 = vld [vmem:[%s0 + $0xa0] sm:$0xff]
    %v33 = vld [vmem:[%s0 + $0xa8] sm:$0xff]
    %v34 = vld [vmem:[%s0 + $0xb0] sm:$0xff]
    %v35 = vld [vmem:[%s0 + $0xb8] sm:$0xff]
    %v36 = vld [vmem:[%s0 + $0xc0] sm:$0xff]
    %v37 = vld [vmem:[%s0 + $0xc8] sm:$0xff]
    %v38 = vld [vmem:[%s0 + $0xd0] sm:$0xff]
    %v39 = vld [vmem:[%s0 + $0xd8] sm:$0xff]
    %v40 = vld [vmem:[%s0 + $0xe0] sm:$0xff]
    %v41 = vld [vmem:[%s0 + $0xe8] sm:$0xff]
    %v42 = vld [vmem:[%s0 + $0xf0] sm:$0xff]
    %v43 = vld [vmem:[%s0 + $0xf8] sm:$0xff]
    %s44 = scalar_lea.vmem %s0, 256
    %v45 = vld [vmem:[%s44] sm:$0xff]
    %v46 = vld [vmem:[%s44 + $0x8] sm:$0xff]
    %v47 = vld [vmem:[%s44 + $0x10] sm:$0xff]
    %v48 = vld [vmem:[%s44 + $0x18] sm:$0xff]
    %v49 = vld [vmem:[%s44 + $0x20] sm:$0xff]
    %v50 = vld [vmem:[%s44 + $0x28] sm:$0xff]
    %v51 = vld [vmem:[%s44 + $0x30] sm:$0xff]
    %v52 = vld [vmem:[%s44 + $0x38] sm:$0xff]
    %v53 = vld [vmem:[%s44 + $0x40] sm:$0xff]
    %v54 = vld [vmem:[%s44 + $0x48] sm:$0xff]
    %v55 = vld [vmem:[%s44 + $0x50] sm:$0xff]
    %v56 = vld [vmem:[%s44 + $0x58] sm:$0xff]
    %v57 = vld [vmem:[%s44 + $0x60] sm:$0xff]
    %v58 = vld [vmem:[%s44 + $0x68] sm:$0xff]
    %v59 = vld [vmem:[%s44 + $0x70] sm:$0xff]
    %v60 = vld [vmem:[%s44 + $0x78] sm:$0xff]
    %v61 = vld [vmem:[%s44 + $0x80] sm:$0xff]
    %v62 = vld [vmem:[%s44 + $0x88] sm:$0xff]
    %v63 = vld [vmem:[%s44 + $0x90] sm:$0xff]
    %v64 = vld [vmem:[%s44 + $0x98] sm:$0xff]
    %v65 = vld [vmem:[%s44 + $0xa0] sm:$0xff]
    %v66 = vld [vmem:[%s44 + $0xa8] sm:$0xff]
    %v67 = vld [vmem:[%s44 + $0xb0] sm:$0xff]
    %v68 = vld [vmem:[%s44 + $0xb8] sm:$0xff]
    %v69 = vld [vmem:[%s44 + $0xc0] sm:$0xff]
    %v70 = vld [vmem:[%s44 + $0xc8] sm:$0xff]
    %v71 = vld [vmem:[%s44 + $0xd0] sm:$0xff]
    %v72 = vld [vmem:[%s44 + $0xd8] sm:$0xff]
    %v73 = vld [vmem:[%s44 + $0xe0] sm:$0xff]
    %v74 = vld [vmem:[%s44 + $0xe8] sm:$0xff]
    %v75 = vld [vmem:[%s44 + $0xf0] sm:$0xff]
    %v76 = vld [vmem:[%s44 + $0xf8] sm:$0xff]
    %v77 = vmul.f32 %v45, 1.442695
    %v78 = vpow.pop %v77
    %v79 = vmul.f32 %v46, 1.442695
    %v80 = vpow.pop %v79
    %v81 = vmul.f32 %v47, 1.442695
    %v82 = vpow.pop %v81
    %v83 = vmul.f32 %v48, 1.442695
    %v84 = vpow.pop %v83
    %v85 = vmul.f32 %v49, 1.442695
    %v86 = vpow.pop %v85
    %v87 = vmul.f32 %v50, 1.442695
    %v88 = vpow.pop %v87
    %v89 = vmul.f32 %v51, 1.442695
    %v90 = vpow.pop %v89
    %v91 = vmul.f32 %v52, 1.442695
    %v92 = vpow.pop %v91
    %v93 = vmul.f32 %v53, 1.442695
    %v94 = vpow.pop %v93
    %v95 = vmul.f32 %v54, 1.442695
    %v96 = vpow.pop %v95
    %v97 = vmul.f32 %v55, 1.442695
    %v98 = vpow.pop %v97
    %v99 = vmul.f32 %v56, 1.442695
    %v100 = vpow.pop %v99
    %v101 = vmul.f32 %v57, 1.442695
    %v102 = vpow.pop %v101
    %v103 = vmul.f32 %v58, 1.442695
    %v104 = vpow.pop %v103
    %v105 = vmul.f32 %v59, 1.442695
    %v106 = vpow.pop %v105
    %v107 = vmul.f32 %v60, 1.442695
    %v108 = vpow.pop %v107
    %v109 = vmul.f32 %v61, 1.442695
    %v110 = vpow.pop %v109
    %v111 = vmul.f32 %v62, 1.442695
    %v112 = vpow.pop %v111
    %v113 = vmul.f32 %v63, 1.442695
    %v114 = vpow.pop %v113
    %v115 = vmul.f32 %v64, 1.442695
    %v116 = vpow.pop %v115
    %v117 = vmul.f32 %v65, 1.442695
    %v118 = vpow.pop %v117
    %v119 = vmul.f32 %v66, 1.442695
    %v120 = vpow.pop %v119
    %v121 = vmul.f32 %v67, 1.442695
    %v122 = vpow.pop %v121
    %v123 = vmul.f32 %v68, 1.442695
    %v124 = vpow.pop %v123
    %v125 = vmul.f32 %v69, 1.442695
    %v126 = vpow.pop %v125
    %v127 = vmul.f32 %v70, 1.442695
    %v128 = vpow.pop %v127
    %v129 = vmul.f32 %v71, 1.442695
    %v130 = vpow.pop %v129
    %v131 = vmul.f32 %v72, 1.442695
    %v132 = vpow.pop %v131
    %v133 = vmul.f32 %v73, 1.442695
    %v134 = vpow.pop %v133
    %v135 = vmul.f32 %v74, 1.442695
    %v136 = vpow.pop %v135
    %v137 = vmul.f32 %v75, 1.442695
    %v138 = vpow.pop %v137
    %v139 = vmul.f32 %v76, 1.442695
    %v140 = vpow.pop %v139
    %s141 = scalar_lea.vmem %s0, 512
    %v142 = vld [vmem:[%s141] sm:$0xff]
    %v143 = vld [vmem:[%s141 + $0x8] sm:$0xff]
    %v144 = vld [vmem:[%s141 + $0x10] sm:$0xff]
    %v145 = vld [vmem:[%s141 + $0x18] sm:$0xff]
    %v146 = vld [vmem:[%s141 + $0x20] sm:$0xff]
    %v147 = vld [vmem:[%s141 + $0x28] sm:$0xff]
    %v148 = vld [vmem:[%s141 + $0x30] sm:$0xff]
    %v149 = vld [vmem:[%s141 + $0x38] sm:$0xff]
    %v150 = vld [vmem:[%s141 + $0x40] sm:$0xff]
    %v151 = vld [vmem:[%s141 + $0x48] sm:$0xff]
    %v152 = vld [vmem:[%s141 + $0x50] sm:$0xff]
    %v153 = vld [vmem:[%s141 + $0x58] sm:$0xff]
    %v154 = vld [vmem:[%s141 + $0x60] sm:$0xff]
    %v155 = vld [vmem:[%s141 + $0x68] sm:$0xff]
    %v156 = vld [vmem:[%s141 + $0x70] sm:$0xff]
    %v157 = vld [vmem:[%s141 + $0x78] sm:$0xff]
    %v158 = vld [vmem:[%s141 + $0x80] sm:$0xff]
    %v159 = vld [vmem:[%s141 + $0x88] sm:$0xff]
    %v160 = vld [vmem:[%s141 + $0x90] sm:$0xff]
    %v161 = vld [vmem:[%s141 + $0x98] sm:$0xff]
    %v162 = vld [vmem:[%s141 + $0xa0] sm:$0xff]
    %v163 = vld [vmem:[%s141 + $0xa8] sm:$0xff]
    %v164 = vld [vmem:[%s141 + $0xb0] sm:$0xff]
    %v165 = vld [vmem:[%s141 + $0xb8] sm:$0xff]
    %v166 = vld [vmem:[%s141 + $0xc0] sm:$0xff]
    %v167 = vld [vmem:[%s141 + $0xc8] sm:$0xff]
    %v168 = vld [vmem:[%s141 + $0xd0] sm:$0xff]
    %v169 = vld [vmem:[%s141 + $0xd8] sm:$0xff]
    %v170 = vld [vmem:[%s141 + $0xe0] sm:$0xff]
    %v171 = vld [vmem:[%s141 + $0xe8] sm:$0xff]
    %v172 = vld [vmem:[%s141 + $0xf0] sm:$0xff]
    %v173 = vld [vmem:[%s141 + $0xf8] sm:$0xff]
    %v174 = vmul.f32 %v78, %v142
    %v175 = vmul.f32 %v80, %v143
    %v176 = vmul.f32 %v82, %v144
    %v177 = vmul.f32 %v84, %v145
    %v178 = vmul.f32 %v86, %v146
    %v179 = vmul.f32 %v88, %v147
    %v180 = vmul.f32 %v90, %v148
    %v181 = vmul.f32 %v92, %v149
    %v182 = vmul.f32 %v94, %v150
    %v183 = vmul.f32 %v96, %v151
    %v184 = vmul.f32 %v98, %v152
    %v185 = vmul.f32 %v100, %v153
    %v186 = vmul.f32 %v102, %v154
    %v187 = vmul.f32 %v104, %v155
    %v188 = vmul.f32 %v106, %v156
    %v189 = vmul.f32 %v108, %v157
    %v190 = vmul.f32 %v110, %v158
    %v191 = vmul.f32 %v112, %v159
    %v192 = vmul.f32 %v114, %v160
    %v193 = vmul.f32 %v116, %v161
    %v194 = vmul.f32 %v118, %v162
    %v195 = vmul.f32 %v120, %v163
    %v196 = vmul.f32 %v122, %v164
    %v197 = vmul.f32 %v124, %v165
    %v198 = vmul.f32 %v126, %v166
    %v199 = vmul.f32 %v128, %v167
    %v200 = vmul.f32 %v130, %v168
    %v201 = vmul.f32 %v132, %v169
    %v202 = vmul.f32 %v134, %v170
    %v203 = vmul.f32 %v136, %v171
    %v204 = vmul.f32 %v138, %v172
    %v205 = vmul.f32 %v140, %v173
    %v206 = vadd.f32 %v12, %v174
    %v207 = vadd.f32 %v13, %v175
    %v208 = vadd.f32 %v14, %v176
    %v209 = vadd.f32 %v15, %v177
    %v210 = vadd.f32 %v16, %v178
    %v211 = vadd.f32 %v17, %v179
    %v212 = vadd.f32 %v18, %v180
    %v213 = vadd.f32 %v19, %v181
    %v214 = vadd.f32 %v20, %v182
    %v215 = vadd.f32 %v21, %v183
    %v216 = vadd.f32 %v22, %v184
    %v217 = vadd.f32 %v23, %v185
    %v218 = vadd.f32 %v24, %v186
    %v219 = vadd.f32 %v25, %v187
    %v220 = vadd.f32 %v26, %v188
    %v221 = vadd.f32 %v27, %v189
    %v222 = vadd.f32 %v28, %v190
    %v223 = vadd.f32 %v29, %v191
    %v224 = vadd.f32 %v30, %v192
    %v225 = vadd.f32 %v31, %v193
    %v226 = vadd.f32 %v32, %v194
    %v227 = vadd.f32 %v33, %v195
    %v228 = vadd.f32 %v34, %v196
    %v229 = vadd.f32 %v35, %v197
    %v230 = vadd.f32 %v36, %v198
    %v231 = vadd.f32 %v37, %v199
    %v232 = vadd.f32 %v38, %v200
    %v233 = vadd.f32 %v39, %v201
    %v234 = vadd.f32 %v40, %v202
    %v235 = vadd.f32 %v41, %v203
    %v236 = vadd.f32 %v42, %v204
    %v237 = vadd.f32 %v43, %v205
    %v238 = vld [vmem:[%s1] sm:$0xff]
    %v239 = vld [vmem:[%s1 + $0x8] sm:$0xff]
    %v240 = vld [vmem:[%s1 + $0x10] sm:$0xff]
    %v241 = vld [vmem:[%s1 + $0x18] sm:$0xff]
    %v242 = vld [vmem:[%s1 + $0x20] sm:$0xff]
    %v243 = vld [vmem:[%s1 + $0x28] sm:$0xff]
    %v244 = vld [vmem:[%s1 + $0x30] sm:$0xff]
    %v245 = vld [vmem:[%s1 + $0x38] sm:$0xff]
    %v246 = vld [vmem:[%s1 + $0x40] sm:$0xff]
    %v247 = vld [vmem:[%s1 + $0x48] sm:$0xff]
    %v248 = vld [vmem:[%s1 + $0x50] sm:$0xff]
    %v249 = vld [vmem:[%s1 + $0x58] sm:$0xff]
    %v250 = vld [vmem:[%s1 + $0x60] sm:$0xff]
    %v251 = vld [vmem:[%s1 + $0x68] sm:$0xff]
    %v252 = vld [vmem:[%s1 + $0x70] sm:$0xff]
    %v253 = vld [vmem:[%s1 + $0x78] sm:$0xff]
    %s254 = scalar_lea.vmem %s1, 128
    %v255 = vld [vmem:[%s254] sm:$0xff]
    %v256 = vld [vmem:[%s254 + $0x8] sm:$0xff]
    %v257 = vld [vmem:[%s254 + $0x10] sm:$0xff]
    %v258 = vld [vmem:[%s254 + $0x18] sm:$0xff]
    %v259 = vld [vmem:[%s254 + $0x20] sm:$0xff]
    %v260 = vld [vmem:[%s254 + $0x28] sm:$0xff]
    %v261 = vld [vmem:[%s254 + $0x30] sm:$0xff]
    %v262 = vld [vmem:[%s254 + $0x38] sm:$0xff]
    %v263 = vld [vmem:[%s254 + $0x40] sm:$0xff]
    %v264 = vld [vmem:[%s254 + $0x48] sm:$0xff]
    %v265 = vld [vmem:[%s254 + $0x50] sm:$0xff]
    %v266 = vld [vmem:[%s254 + $0x58] sm:$0xff]
    %v267 = vld [vmem:[%s254 + $0x60] sm:$0xff]
    %v268 = vld [vmem:[%s254 + $0x68] sm:$0xff]
    %v269 = vld [vmem:[%s254 + $0x70] sm:$0xff]
    %v270 = vld [vmem:[%s254 + $0x78] sm:$0xff]
    %v271 = vmul.f32 %v255, 1.442695
    %v272 = vpow.pop %v271
    %v273 = vmul.f32 %v256, 1.442695
    %v274 = vpow.pop %v273
    %v275 = vmul.f32 %v257, 1.442695
    %v276 = vpow.pop %v275
    %v277 = vmul.f32 %v258, 1.442695
    %v278 = vpow.pop %v277
    %v279 = vmul.f32 %v259, 1.442695
    %v280 = vpow.pop %v279
    %v281 = vmul.f32 %v260, 1.442695
    %v282 = vpow.pop %v281
    %v283 = vmul.f32 %v261, 1.442695
    %v284 = vpow.pop %v283
    %v285 = vmul.f32 %v262, 1.442695
    %v286 = vpow.pop %v285
    %v287 = vmul.f32 %v263, 1.442695
    %v288 = vpow.pop %v287
    %v289 = vmul.f32 %v264, 1.442695
    %v290 = vpow.pop %v289
    %v291 = vmul.f32 %v265, 1.442695
    %v292 = vpow.pop %v291
    %v293 = vmul.f32 %v266, 1.442695
    %v294 = vpow.pop %v293
    %v295 = vmul.f32 %v267, 1.442695
    %v296 = vpow.pop %v295
    %v297 = vmul.f32 %v268, 1.442695
    %v298 = vpow.pop %v297
    %v299 = vmul.f32 %v269, 1.442695
    %v300 = vpow.pop %v299
    %v301 = vmul.f32 %v270, 1.442695
    %v302 = vpow.pop %v301
    %s303 = scalar_lea.vmem %s1, 256
    %v304 = vld [vmem:[%s303] sm:$0xff]
    %v305 = vld [vmem:[%s303 + $0x8] sm:$0xff]
    %v306 = vld [vmem:[%s303 + $0x10] sm:$0xff]
    %v307 = vld [vmem:[%s303 + $0x18] sm:$0xff]
    %v308 = vld [vmem:[%s303 + $0x20] sm:$0xff]
    %v309 = vld [vmem:[%s303 + $0x28] sm:$0xff]
    %v310 = vld [vmem:[%s303 + $0x30] sm:$0xff]
    %v311 = vld [vmem:[%s303 + $0x38] sm:$0xff]
    %v312 = vld [vmem:[%s303 + $0x40] sm:$0xff]
    %v313 = vld [vmem:[%s303 + $0x48] sm:$0xff]
    %v314 = vld [vmem:[%s303 + $0x50] sm:$0xff]
    %v315 = vld [vmem:[%s303 + $0x58] sm:$0xff]
    %v316 = vld [vmem:[%s303 + $0x60] sm:$0xff]
    %v317 = vld [vmem:[%s303 + $0x68] sm:$0xff]
    %v318 = vld [vmem:[%s303 + $0x70] sm:$0xff]
    %v319 = vld [vmem:[%s303 + $0x78] sm:$0xff]
    %v320 = vmul.f32 %v272, %v304
    %v321 = vmul.f32 %v274, %v305
    %v322 = vmul.f32 %v276, %v306
    %v323 = vmul.f32 %v278, %v307
    %v324 = vmul.f32 %v280, %v308
    %v325 = vmul.f32 %v282, %v309
    %v326 = vmul.f32 %v284, %v310
    %v327 = vmul.f32 %v286, %v311
    %v328 = vmul.f32 %v288, %v312
    %v329 = vmul.f32 %v290, %v313
    %v330 = vmul.f32 %v292, %v314
    %v331 = vmul.f32 %v294, %v315
    %v332 = vmul.f32 %v296, %v316
    %v333 = vmul.f32 %v298, %v317
    %v334 = vmul.f32 %v300, %v318
    %v335 = vmul.f32 %v302, %v319
    %v336 = vadd.f32 %v238, %v320
    %v337 = vadd.f32 %v239, %v321
    %v338 = vadd.f32 %v240, %v322
    %v339 = vadd.f32 %v241, %v323
    %v340 = vadd.f32 %v242, %v324
    %v341 = vadd.f32 %v243, %v325
    %v342 = vadd.f32 %v244, %v326
    %v343 = vadd.f32 %v245, %v327
    %v344 = vadd.f32 %v246, %v328
    %v345 = vadd.f32 %v247, %v329
    %v346 = vadd.f32 %v248, %v330
    %v347 = vadd.f32 %v249, %v331
    %v348 = vadd.f32 %v250, %v332
    %v349 = vadd.f32 %v251, %v333
    %v350 = vadd.f32 %v252, %v334
    %v351 = vadd.f32 %v253, %v335
    %vm352 = vcmask 261120
    %v354 = vsel %vm352, %v206, 0
    %v357 = vsel %vm352, %v207, 0
    %v360 = vsel %vm352, %v208, 0
    %v363 = vsel %vm352, %v209, 0
    %v366 = vsel %vm352, %v210, 0
    %v369 = vsel %vm352, %v211, 0
    %v372 = vsel %vm352, %v212, 0
    %v375 = vsel %vm352, %v213, 0
    %v378 = vsel %vm352, %v214, 0
    %v381 = vsel %vm352, %v215, 0
    %v384 = vsel %vm352, %v216, 0
    %v387 = vsel %vm352, %v217, 0
    %v390 = vsel %vm352, %v218, 0
    %v393 = vsel %vm352, %v219, 0
    %v396 = vsel %vm352, %v220, 0
    %v399 = vsel %vm352, %v221, 0
    %v402 = vsel %vm352, %v222, 0
    %v405 = vsel %vm352, %v223, 0
    %v408 = vsel %vm352, %v224, 0
    %v411 = vsel %vm352, %v225, 0
    %v414 = vsel %vm352, %v226, 0
    %v417 = vsel %vm352, %v227, 0
    %v420 = vsel %vm352, %v228, 0
    %v423 = vsel %vm352, %v229, 0
    %v426 = vsel %vm352, %v230, 0
    %v429 = vsel %vm352, %v231, 0
    %v432 = vsel %vm352, %v232, 0
    %v435 = vsel %vm352, %v233, 0
    %v438 = vsel %vm352, %v234, 0
    %v441 = vsel %vm352, %v235, 0
    %v444 = vsel %vm352, %v236, 0
    %v447 = vsel %vm352, %v237, 0
    %v450 = vsel %vm352, %v336, 0
    %v453 = vsel %vm352, %v337, 0
    %v456 = vsel %vm352, %v338, 0
    %v459 = vsel %vm352, %v339, 0
    %v462 = vsel %vm352, %v340, 0
    %v465 = vsel %vm352, %v341, 0
    %v468 = vsel %vm352, %v342, 0
    %v471 = vsel %vm352, %v343, 0
    %v474 = vsel %vm352, %v344, 0
    %v477 = vsel %vm352, %v345, 0
    %v480 = vsel %vm352, %v346, 0
    %v483 = vsel %vm352, %v347, 0
    %v486 = vsel %vm352, %v348, 0
    %v489 = vsel %vm352, %v349, 0
    %v492 = vsel %vm352, %v350, 0
    %v495 = vsel %vm352, %v351, 0
    %497 = vmatprep.subr.mxu0 0.0
    %498 = vmatpush1.xpose.msra.mxu0 %v450
    %499 = vmatprep.subr.mxu0 0.0
    %500 = vmatpush1.xpose.msra.mxu0 %v453
    %501 = vmatprep.subr.mxu0 0.0
    %502 = vmatpush1.xpose.msra.mxu0 %v456
    %503 = vmatprep.subr.mxu0 0.0
    %504 = vmatpush1.xpose.msra.mxu0 %v459
    %505 = vmatprep.subr.mxu0 0.0
    %506 = vmatpush1.xpose.msra.mxu0 %v462
    %507 = vmatprep.subr.mxu0 0.0
    %508 = vmatpush1.xpose.msra.mxu0 %v465
    %509 = vmatprep.subr.mxu0 0.0
    %510 = vmatpush1.xpose.msra.mxu0 %v468
    %511 = vmatprep.subr.mxu0 0.0
    %512 = vmatpush1.xpose.msra.mxu0 %v471
    %513 = vmatprep.subr.mxu0 0.0
    %514 = vmatpush1.xpose.msra.mxu0 %v474
    %515 = vmatprep.subr.mxu0 0.0
    %516 = vmatpush1.xpose.msra.mxu0 %v477
    %517 = vmatprep.subr.mxu0 0.0
    %518 = vmatpush1.xpose.msra.mxu0 %v480
    %519 = vmatprep.subr.mxu0 0.0
    %520 = vmatpush1.xpose.msra.mxu0 %v483
    %521 = vmatprep.subr.mxu0 0.0
    %522 = vmatpush1.xpose.msra.mxu0 %v486
    %523 = vmatprep.subr.mxu0 0.0
    %524 = vmatpush1.xpose.msra.mxu0 %v489
    %525 = vmatprep.subr.mxu0 0.0
    %526 = vmatpush1.xpose.msra.mxu0 %v492
    %527 = vmatprep.subr.mxu0 0.0
    %528 = vmatpush1.xpose.msra.mxu0 %v495
    %529 = vmatprep.subr.mxu0 0.0
    %530 = vmatpush1.xpose.msra.mxu0 0.0
    %531 = vmatprep.subr.mxu0 0.0
    %532 = vmatpush1.xpose.msra.mxu0 0.0
    %533 = vmatprep.subr.mxu0 0.0
    %534 = vmatpush1.xpose.msra.mxu0 0.0
    %535 = vmatprep.subr.mxu0 0.0
    %536 = vmatpush1.xpose.msra.mxu0 0.0
    %537 = vmatprep.subr.mxu0 0.0
    %538 = vmatpush1.xpose.msra.mxu0 0.0
    %539 = vmatprep.subr.mxu0 0.0
    %540 = vmatpush1.xpose.msra.mxu0 0.0
    %541 = vmatprep.subr.mxu0 0.0
    %542 = vmatpush1.xpose.msra.mxu0 0.0
    %543 = vmatprep.subr.mxu0 0.0
    %544 = vmatpush1.xpose.msra.mxu0 0.0
    %545 = vmatprep.subr.mxu0 0.0
    %546 = vmatpush1.xpose.msra.mxu0 0.0
    %547 = vmatprep.subr.mxu0 0.0
    %548 = vmatpush1.xpose.msra.mxu0 0.0
    %549 = vmatprep.subr.mxu0 0.0
    %550 = vmatpush1.xpose.msra.mxu0 0.0
    %551 = vmatprep.subr.mxu0 0.0
    %552 = vmatpush1.xpose.msra.mxu0 0.0
    %553 = vmatprep.subr.mxu0 0.0
    %554 = vmatpush1.xpose.msra.mxu0 0.0
    %555 = vmatprep.subr.mxu0 0.0
    %556 = vmatpush1.xpose.msra.mxu0 0.0
    %557 = vmatprep.subr.mxu0 0.0
    %558 = vmatpush1.xpose.msra.mxu0 0.0
    %559 = vmatprep.subr.mxu0 0.0
    %560 = vmatpush1.xpose.msra.mxu0 0.0
    %561 = vmatprep.mubr.f32.mxu0 0.0
    %562 = vmatmul.mubr.f32.gmra.mrb[0].mxu0 %v354
    %v563 = vpop.f32.mrb[0].mxu0
    %v564 = vadd.f32 0.0, %v563
    %v565 = vpop.f32.mrb[0].mxu0
    %566 = vmatprep.mubr.f32.mxu0 0.0
    %567 = vmatmul.mubr.f32.gmra.mrb[0].mxu0 %v357
    %v568 = vpop.f32.mrb[0].mxu0
    %v569 = vadd.f32 0.0, %v568
    %v570 = vpop.f32.mrb[0].mxu0
    %571 = vmatprep.mubr.f32.mxu0 0.0
    %572 = vmatmul.mubr.f32.gmra.mrb[0].mxu0 %v360
    %v573 = vpop.f32.mrb[0].mxu0
    %v574 = vadd.f32 0.0, %v573
    %v575 = vpop.f32.mrb[0].mxu0
    %576 = vmatprep.mubr.f32.mxu0 0.0
    %577 = vmatmul.mubr.f32.gmra.mrb[0].mxu0 %v363
    %v578 = vpop.f32.mrb[0].mxu0
    %v579 = vadd.f32 0.0, %v578
    %v580 = vpop.f32.mrb[0].mxu0
    %581 = vmatprep.mubr.f32.mxu0 0.0
    %582 = vmatmul.mubr.f32.gmra.mrb[0].mxu0 %v366
    %v583 = vpop.f32.mrb[0].mxu0
    %v584 = vadd.f32 0.0, %v583
    %v585 = vpop.f32.mrb[0].mxu0
    %586 = vmatprep.mubr.f32.mxu0 0.0
    %587 = vmatmul.mubr.f32.gmra.mrb[0].mxu0 %v369
    %v588 = vpop.f32.mrb[0].mxu0
    %v589 = vadd.f32 0.0, %v588
    %v590 = vpop.f32.mrb[0].mxu0
    %591 = vmatprep.mubr.f32.mxu0 0.0
    %592 = vmatmul.mubr.f32.gmra.mrb[0].mxu0 %v372
    %v593 = vpop.f32.mrb[0].mxu0
    %v594 = vadd.f32 0.0, %v593
    %v595 = vpop.f32.mrb[0].mxu0
    %596 = vmatprep.mubr.f32.mxu0 0.0
    %597 = vmatmul.mubr.f32.gmra.mrb[0].mxu0 %v375
    %v598 = vpop.f32.mrb[0].mxu0
    %v599 = vadd.f32 0.0, %v598
    %v600 = vpop.f32.mrb[0].mxu0
    %601 = vmatprep.mubr.f32.mxu0 0.0
    %602 = vmatmul.mubr.f32.gmra.mrb[0].mxu0 %v378
    %v603 = vpop.f32.mrb[0].mxu0
    %v604 = vadd.f32 0.0, %v603
    %v605 = vpop.f32.mrb[0].mxu0
    %606 = vmatprep.mubr.f32.mxu0 0.0
    %607 = vmatmul.mubr.f32.gmra.mrb[0].mxu0 %v381
    %v608 = vpop.f32.mrb[0].mxu0
    %v609 = vadd.f32 0.0, %v608
    %v610 = vpop.f32.mrb[0].mxu0
    %611 = vmatprep.mubr.f32.mxu0 0.0
    %612 = vmatmul.mubr.f32.gmra.mrb[0].mxu0 %v384
    %v613 = vpop.f32.mrb[0].mxu0
    %v614 = vadd.f32 0.0, %v613
    %v615 = vpop.f32.mrb[0].mxu0
    %616 = vmatprep.mubr.f32.mxu0 0.0
    %617 = vmatmul.mubr.f32.gmra.mrb[0].mxu0 %v387
    %v618 = vpop.f32.mrb[0].mxu0
    %v619 = vadd.f32 0.0, %v618
    %v620 = vpop.f32.mrb[0].mxu0
    %621 = vmatprep.mubr.f32.mxu0 0.0
    %622 = vmatmul.mubr.f32.gmra.mrb[0].mxu0 %v390
    %v623 = vpop.f32.mrb[0].mxu0
    %v624 = vadd.f32 0.0, %v623
    %v625 = vpop.f32.mrb[0].mxu0
    %626 = vmatprep.mubr.f32.mxu0 0.0
    %627 = vmatmul.mubr.f32.gmra.mrb[0].mxu0 %v393
    %v628 = vpop.f32.mrb[0].mxu0
    %v629 = vadd.f32 0.0, %v628
    %v630 = vpop.f32.mrb[0].mxu0
    %631 = vmatprep.mubr.f32.mxu0 0.0
    %632 = vmatmul.mubr.f32.gmra.mrb[0].mxu0 %v396
    %v633 = vpop.f32.mrb[0].mxu0
    %v634 = vadd.f32 0.0, %v633
    %v635 = vpop.f32.mrb[0].mxu0
    %636 = vmatprep.mubr.f32.mxu0 0.0
    %637 = vmatmul.mubr.f32.gmra.mrb[0].mxu0 %v399
    %v638 = vpop.f32.mrb[0].mxu0
    %v639 = vadd.f32 0.0, %v638
    %v640 = vpop.f32.mrb[0].mxu0
    %641 = vmatprep.mubr.f32.mxu0 0.0
    %642 = vmatmul.mubr.f32.gmra.mrb[0].mxu0 %v402
    %v643 = vpop.f32.mrb[0].mxu0
    %v644 = vadd.f32 0.0, %v643
    %v645 = vpop.f32.mrb[0].mxu0
    %646 = vmatprep.mubr.f32.mxu0 0.0
    %647 = vmatmul.mubr.f32.gmra.mrb[0].mxu0 %v405
    %v648 = vpop.f32.mrb[0].mxu0
    %v649 = vadd.f32 0.0, %v648
    %v650 = vpop.f32.mrb[0].mxu0
    %651 = vmatprep.mubr.f32.mxu0 0.0
    %652 = vmatmul.mubr.f32.gmra.mrb[0].mxu0 %v408
    %v653 = vpop.f32.mrb[0].mxu0
    %v654 = vadd.f32 0.0, %v653
    %v655 = vpop.f32.mrb[0].mxu0
    %656 = vmatprep.mubr.f32.mxu0 0.0
    %657 = vmatmul.mubr.f32.gmra.mrb[0].mxu0 %v411
    %v658 = vpop.f32.mrb[0].mxu0
    %v659 = vadd.f32 0.0, %v658
    %v660 = vpop.f32.mrb[0].mxu0
    %661 = vmatprep.mubr.f32.mxu0 0.0
    %662 = vmatmul.mubr.f32.gmra.mrb[0].mxu0 %v414
    %v663 = vpop.f32.mrb[0].mxu0
    %v664 = vadd.f32 0.0, %v663
    %v665 = vpop.f32.mrb[0].mxu0
    %666 = vmatprep.mubr.f32.mxu0 0.0
    %667 = vmatmul.mubr.f32.gmra.mrb[0].mxu0 %v417
    %v668 = vpop.f32.mrb[0].mxu0
    %v669 = vadd.f32 0.0, %v668
    %v670 = vpop.f32.mrb[0].mxu0
    %671 = vmatprep.mubr.f32.mxu0 0.0
    %672 = vmatmul.mubr.f32.gmra.mrb[0].mxu0 %v420
    %v673 = vpop.f32.mrb[0].mxu0
    %v674 = vadd.f32 0.0, %v673
    %v675 = vpop.f32.mrb[0].mxu0
    %676 = vmatprep.mubr.f32.mxu0 0.0
    %677 = vmatmul.mubr.f32.gmra.mrb[0].mxu0 %v423
    %v678 = vpop.f32.mrb[0].mxu0
    %v679 = vadd.f32 0.0, %v678
    %v680 = vpop.f32.mrb[0].mxu0
    %681 = vmatprep.mubr.f32.mxu0 0.0
    %682 = vmatmul.mubr.f32.gmra.mrb[0].mxu0 %v426
    %v683 = vpop.f32.mrb[0].mxu0
    %v684 = vadd.f32 0.0, %v683
    %v685 = vpop.f32.mrb[0].mxu0
    %686 = vmatprep.mubr.f32.mxu0 0.0
    %687 = vmatmul.mubr.f32.gmra.mrb[0].mxu0 %v429
    %v688 = vpop.f32.mrb[0].mxu0
    %v689 = vadd.f32 0.0, %v688
    %v690 = vpop.f32.mrb[0].mxu0
    %691 = vmatprep.mubr.f32.mxu0 0.0
    %692 = vmatmul.mubr.f32.gmra.mrb[0].mxu0 %v432
    %v693 = vpop.f32.mrb[0].mxu0
    %v694 = vadd.f32 0.0, %v693
    %v695 = vpop.f32.mrb[0].mxu0
    %696 = vmatprep.mubr.f32.mxu0 0.0
    %697 = vmatmul.mubr.f32.gmra.mrb[0].mxu0 %v435
    %v698 = vpop.f32.mrb[0].mxu0
    %v699 = vadd.f32 0.0, %v698
    %v700 = vpop.f32.mrb[0].mxu0
    %701 = vmatprep.mubr.f32.mxu0 0.0
    %702 = vmatmul.mubr.f32.gmra.mrb[0].mxu0 %v438
    %v703 = vpop.f32.mrb[0].mxu0
    %v704 = vadd.f32 0.0, %v703
    %v705 = vpop.f32.mrb[0].mxu0
    %706 = vmatprep.mubr.f32.mxu0 0.0
    %707 = vmatmul.mubr.f32.gmra.mrb[0].mxu0 %v441
    %v708 = vpop.f32.mrb[0].mxu0
    %v709 = vadd.f32 0.0, %v708
    %v710 = vpop.f32.mrb[0].mxu0
    %711 = vmatprep.mubr.f32.mxu0 0.0
    %712 = vmatmul.mubr.f32.gmra.mrb[0].mxu0 %v444
    %v713 = vpop.f32.mrb[0].mxu0
    %v714 = vadd.f32 0.0, %v713
    %v715 = vpop.f32.mrb[0].mxu0
    %716 = vmatprep.mubr.f32.mxu0 0.0
    %717 = vmatmul.mubr.f32.gmra.mrb[0].mxu0 %v447
    %v718 = vpop.f32.mrb[0].mxu0
    %v719 = vadd.f32 0.0, %v718
    %v720 = vpop.f32.mrb[0].mxu0
    %721 = vdwg.mxu0
    %722 = vst [vmem:[#allocation2] sm:$0xff] %v564
    %723 = vst [vmem:[#allocation2 + $0x8] sm:$0xff] %v569
    %724 = vst [vmem:[#allocation2 + $0x10] sm:$0xff] %v574
    %725 = vst [vmem:[#allocation2 + $0x18] sm:$0xff] %v579
    %726 = vst [vmem:[#allocation2 + $0x20] sm:$0xff] %v584
    %727 = vst [vmem:[#allocation2 + $0x28] sm:$0xff] %v589
    %728 = vst [vmem:[#allocation2 + $0x30] sm:$0xff] %v594
    %729 = vst [vmem:[#allocation2 + $0x38] sm:$0xff] %v599
    %730 = vst [vmem:[#allocation2 + $0x40] sm:$0xff] %v604
    %731 = vst [vmem:[#allocation2 + $0x48] sm:$0xff] %v609
    %732 = vst [vmem:[#allocation2 + $0x50] sm:$0xff] %v614
    %733 = vst [vmem:[#allocation2 + $0x58] sm:$0xff] %v619
    %734 = vst [vmem:[#allocation2 + $0x60] sm:$0xff] %v624
    %735 = vst [vmem:[#allocation2 + $0x68] sm:$0xff] %v629
    %736 = vst [vmem:[#allocation2 + $0x70] sm:$0xff] %v634
    %737 = vst [vmem:[#allocation2 + $0x78] sm:$0xff] %v639
    %738 = vst [vmem:[#allocation2 + $0x80] sm:$0xff] %v644
    %739 = vst [vmem:[#allocation2 + $0x88] sm:$0xff] %v649
    %740 = vst [vmem:[#allocation2 + $0x90] sm:$0xff] %v654
    %741 = vst [vmem:[#allocation2 + $0x98] sm:$0xff] %v659
    %742 = vst [vmem:[#allocation2 + $0xa0] sm:$0xff] %v664
    %743 = vst [vmem:[#allocation2 + $0xa8] sm:$0xff] %v669
    %744 = vst [vmem:[#allocation2 + $0xb0] sm:$0xff] %v674
    %745 = vst [vmem:[#allocation2 + $0xb8] sm:$0xff] %v679
    %746 = vst [vmem:[#allocation2 + $0xc0] sm:$0xff] %v684
    %747 = vst [vmem:[#allocation2 + $0xc8] sm:$0xff] %v689
    %748 = vst [vmem:[#allocation2 + $0xd0] sm:$0xff] %v694
    %749 = vst [vmem:[#allocation2 + $0xd8] sm:$0xff] %v699
    %750 = vst [vmem:[#allocation2 + $0xe0] sm:$0xff] %v704
    %751 = vst [vmem:[#allocation2 + $0xe8] sm:$0xff] %v709
    %752 = vst [vmem:[#allocation2 + $0xf0] sm:$0xff] %v714
    %753 = vst [vmem:[#allocation2 + $0xf8] sm:$0xff] %v719
    // Predicated region
    $region10: #{tpu_custom_call.1} parent=1 // pred_check
      _
    $region11: #{tpu_custom_call.1} parent=1 // pred_check_branch
      %755 = sbr.rel (0) target = $region13
    $region12: #{tpu_custom_call.1} parent=1 // pred_region
      %s757 = ssub.s32 4096, 4096
      %758 = vsyncadd [#allocation3], %s757
      %s759 = sshll.u32 [#allocation2], 4
      %s760 = int_to_ptr.vmem [resolvable:$true] %s759
      %765 = dma.vmem_to_hbm [thread:$0]  %s760, 4096, %s2, [#allocation3], 128, 128, 8
    $region13: #{tpu_custom_call.1} parent=1 // pred_fallthru
      _
    // Predicated region
    $region14: #{tpu_custom_call.1} parent=1 // pred_check
      _
    $region15: #{tpu_custom_call.1} parent=1 // pred_check_branch
      %767 = sbr.rel (0) target = $region17
    $region16: #{tpu_custom_call.1} parent=1 // pred_region
      %768 = dma.done [#allocation3], 4096
    $region17: #{tpu_custom_call.1} parent=1 // pred_fallthru
      _
    %769 = vsyncpa [#allocation3], 1

</llo_original>
